<compile_context>
chip_gen: v7x
topology: tpu7x:2x2x1
jax: 0.10.0
libtpu: 0.0.40
codegen_flags: <defaults>
</compile_context>

<pallas_src>
import jax
import jax.numpy as jnp
from jax.experimental import pallas as pl
from jax.experimental.pallas import tpu as pltpu

_LANE = 128


def make_positional_table(d: int, max_len: int) -> jnp.ndarray:
    """Deterministic parameter setup (mirrors Positional.__init__)."""
    assert d % 2 == 0, "Positional requires an even model dim d (as in the PyTorch module)"
    t = jnp.arange(1, max_len + 1, dtype=jnp.float32)[:, None]            # (max_len, 1)
    wk = 1.0 / (10000.0 ** (jnp.arange(0, d, 2, dtype=jnp.float32) / d))  # (d/2,)
    angle = wk * t                                                        # (max_len, d/2)
    pos = jnp.zeros((max_len, d), dtype=jnp.float32)
    pos = pos.at[:, 0::2].set(jnp.sin(angle))
    pos = pos.at[:, 1::2].set(jnp.cos(angle))
    return pos


def _add_pos_kernel(emb_ref, pos_ref, out_ref):
    # emb_ref / out_ref: (tB, tF); pos_ref: (1, tF).
    # Lane-dense elementwise add; the (1, tF) -> (tB, tF) sublane broadcast is
    # a cheap VPU op, done once per grid step.
    out_ref[...] = emb_ref[...] + pos_ref[...]


def _choose_tiles(B: int, F: int, itemsize: int, sublane_mult: int,
                  target_bytes: int = 4 << 20):
    """Pick a (tB, tF) block for the flattened (B, F=S*D) layout.

    Preference order:
      1. Fold the whole batch into the block (grid steps = num_f only) with a
         lane-dense tF (multiple of 128 or full F) sized to ~target_bytes.
      2. If the batch alone is too large for a lane-dense slab, tile the batch
         too, rounding tB to the dtype's sublane-packing multiple.
    """
    cols = (target_bytes // max(1, B * itemsize)) // _LANE * _LANE
    if cols >= _LANE:
        return B, min(cols, F)          # full-batch fold; tF multiple of 128 (or full F)
    # Huge batch: keep one lane group along F and tile the batch dim.
    tF = min(F, _LANE)
    rows = (target_bytes // max(1, tF * itemsize)) // sublane_mult * sublane_mult
    tB = min(max(rows, sublane_mult), B)
    return tB, tF


def positional_forward(embedding: jnp.ndarray, pos_table: jnp.ndarray,
                       *, target_block_bytes: int = 4 << 20) -> jnp.ndarray:
    """embedding: (B, S, D); pos_table: (max_len, D) with max_len >= S.

    Returns embedding + pos_table[:S][None], in embedding.dtype.

    Contract notes:
      * The embedding HBM buffer is aliased into the output
        (input_output_aliases={0: 0}).  For the alias to take effect without a
        defensive copy, donate `embedding` (e.g. jax.jit donate_argnums) and do
        not reuse it after this call.
      * The pos table is cast once to embedding.dtype before the add; for bf16
        embeddings this keeps the result in bf16 (PyTorch would promote to
        f32) -- acceptable for positional encodings.
    """
    B, S, D = embedding.shape
    max_len, d = pos_table.shape
    if d != D:
        raise ValueError(f"model dim mismatch: embedding D={D} vs pos table d={d}")
    if S > max_len:
        raise ValueError(f"sequence length {S} exceeds positional max_len {max_len}")

    dtype = embedding.dtype
    itemsize = jnp.dtype(dtype).itemsize
    sublane_mult = 8 * max(1, 4 // itemsize)   # 8 f32, 16 bf16/f16, 32 int8/fp8

    # Static slice (self.pos[:S, :]) + one-time cast to the embedding dtype.
    pos_slice = pos_table[:S, :].astype(dtype)

    # Lane-density: flatten (S, D) -> F so the kernel's last dim is tiled in
    # multiples of 128 lanes regardless of D. Pure layout plumbing (row-major
    # reshape), free in the wrapper.
    F = S * D
    emb2d = embedding.reshape(B, F)
    pos2d = pos_slice.reshape(1, F)

    tB, tF = _choose_tiles(B, F, itemsize, sublane_mult, target_block_bytes)
    num_f = pl.cdiv(F, tF)
    num_b = pl.cdiv(B, tB)

    # Explicit scoped-VMEM limit: double buffers for emb-in, out and pos, plus
    # headroom. Safe on every generation (physical VMEM >= 64 MiB everywhere),
    # and sidesteps v5e's 16 MiB default scoped limit.
    block_bytes = tB * tF * itemsize
    pos_bytes = tF * itemsize
    vmem_limit = int(min(48 << 20, max(2 * (2 * block_bytes + pos_bytes) + (2 << 20),
                                       8 << 20)))

    cost = pl.CostEstimate(
        flops=B * F,
        transcendentals=0,
        bytes_accessed=(2 * B * F + F) * itemsize,
    )

    out2d = pl.pallas_call(
        _add_pos_kernel,
        out_shape=jax.ShapeDtypeStruct((B, F), dtype),
        grid_spec=pltpu.PrefetchScalarGridSpec(
            num_scalar_prefetch=0,
            # F-tiles outermost, batch-tiles innermost: the pos block index
            # depends only on the F-tile, so it stays resident across inner
            # batch steps (num_b == 1 in the common folded-batch case).
            grid=(num_f, num_b),
            in_specs=[
                pl.BlockSpec((tB, tF), lambda f, b: (b, f)),
                pl.BlockSpec((1, tF), lambda f, b: (0, f)),
            ],
            out_specs=pl.BlockSpec((tB, tF), lambda f, b: (b, f)),
        ),
        compiler_params=pltpu.CompilerParams(
            dimension_semantics=("parallel", "parallel"),
            vmem_limit_bytes=vmem_limit,
        ),
        cost_estimate=cost,
        # Reuse the embedding buffer for the output (caller should donate).
        input_output_aliases={0: 0},
    )(emb2d, pos2d)

    # TODO(synk): optional B<=2 variant that synthesizes the pos tile in-kernel
    # (iota + sin/cos on the idle EUP) instead of streaming it from HBM.
    return out2d.reshape(B, S, D)


if __name__ == "__main__":
    # Small deterministic example: batch=2, seq=8, d=32, max_len=16.
    B, S, D, MAX_LEN = 2, 8, 32, 16

    key = jax.random.PRNGKey(0)
    embedding = jax.random.normal(key, (B, S, D), dtype=jnp.float32)
    pos_table = make_positional_table(D, MAX_LEN)

    # Compute the reference BEFORE the kernel call: the embedding buffer is
    # aliased into the output via input_output_aliases.
    ref = embedding + pos_table[:S, :][None, :, :]

    out = positional_forward(embedding, pos_table)
    out = jax.block_until_ready(out)

    assert out.shape == (B, S, D)
    assert jnp.allclose(out, ref, atol=1e-6), "mismatch vs reference"

    print("KERNEL_OK")
</pallas_src>

<mosaic_0001>
module attributes {stable_mosaic.version = 11 : i64} {
  func.func @_add_pos_kernel(%arg0: i32, %arg1: i32, %arg2: memref<2x256xf32, #tpu.memory_space<vmem>>, %arg3: memref<1x256xf32, #tpu.memory_space<vmem>>, %arg4: memref<2x256xf32, #tpu.memory_space<vmem>>) attributes {dimension_semantics = [#tpu.dimension_semantics<parallel>, #tpu.dimension_semantics<parallel>], iteration_bounds = array<i64: 1, 1>, scalar_prefetch = 0 : i64, scratch_operands = 0 : i64, tpu.core_type = #tpu.core_type<tc>, window_params = [{transform_indices = @transform_0, window_bounds = array<i64: 2, 256>}, {transform_indices = @transform_1, window_bounds = array<i64: 1, 256>}, {transform_indices = @transform_2, window_bounds = array<i64: 2, 256>}]} {
    %c0 = arith.constant 0 : index
    %c0_0 = arith.constant 0 : index
    %0 = vector.load %arg2[%c0, %c0_0] : memref<2x256xf32, #tpu.memory_space<vmem>>, vector<2x256xf32>
    %c0_1 = arith.constant 0 : index
    %c0_2 = arith.constant 0 : index
    %1 = vector.load %arg3[%c0_1, %c0_2] : memref<1x256xf32, #tpu.memory_space<vmem>>, vector<1x256xf32>
    %2 = vector.broadcast %1 : vector<1x256xf32> to vector<2x256xf32>
    %3 = arith.addf %0, %2 : vector<2x256xf32>
    %c0_3 = arith.constant 0 : index
    %c0_4 = arith.constant 0 : index
    %4 = vector.load %arg4[%c0_3, %c0_4] : memref<2x256xf32, #tpu.memory_space<vmem>>, vector<2x256xf32>
    tpu.vector_store %arg4[%c0_3, %c0_4], %3 {strides = array<i32>} : memref<2x256xf32, #tpu.memory_space<vmem>>, vector<2x256xf32>,
    return
  }
  func.func @transform_0(%arg0: i32, %arg1: i32) -> (i32, i32) {
    %c0_i32 = arith.constant 0 : i32
    return %arg1, %arg0 : i32, i32
  }
  func.func @transform_1(%arg0: i32, %arg1: i32) -> (i32, i32) {
    %c0_i32 = arith.constant 0 : i32
    %c0_i32_0 = arith.constant 0 : i32
    return %c0_i32, %arg0 : i32, i32
  }
  func.func @transform_2(%arg0: i32, %arg1: i32) -> (i32, i32) {
    %c0_i32 = arith.constant 0 : i32
    return %arg1, %arg0 : i32, i32
  }
}

</mosaic_0001>

<llo_original>
// kernel: tpu_custom_call.1
$region0: #{tpu_custom_call.1}
  #allocation0 [shape = 'u32[]', space=smem, size = 0x4, offset = 0x4, fixed_abs, tag = 'smem constant byte address 0x4 - core index']
  #allocation1 [shape = 'u32[144,128]{1,0:T(1,128)}', space=vmem, size = 0x12000, scoped, tag = 'internal scratch']
  %s0 = inlined_call_operand.hbm [shape: f32[2,256], index: 0, kind: input, shape index: {}, may-alias: {0,2}]
  %s1 = inlined_call_operand.vmem [shape: f32[1,256], index: 1, kind: input, shape index: {}]
  %s2 = inlined_call_operand.hbm [shape: f32[2,256], index: 2, kind: output, shape index: {}, may-alias: {0,2}]
  %s3 = sld [smem:[#allocation0]]
  $region22: #{tpu_custom_call.1} parent=0
    _
  %s5 = ssub.s32 1, %s3
  %s6 = scalar_select 0, %s5, %s3
  $region1: #{tpu_custom_call.1} parent=0
    #allocation2 [shape = 'u8[2048]{0}', space=vmem, size = 0x800, scoped, tag = 'input window, operand 0, single buffered']
    #allocation3 [shape = 's32[1]{0}', space=sflag, size = 0x4, scoped, tag = 'scoped memory for tpu_custom_call.1']
    #allocation4 [shape = 's32[1]{0}', space=sflag, size = 0x4, scoped, tag = 'scoped memory for tpu_custom_call.1']
    #allocation5 [shape = 'u8[2048]{0}', space=vmem, size = 0x800, scoped, tag = 'output window, operand 0, single buffered']
    %7 = vsyncpa [#allocation3], 0
    %8 = vsyncpa [#allocation4], 0
    // Predicated region
    $region2: #{tpu_custom_call.1} parent=1 // pred_check
      _
    $region3: #{tpu_custom_call.1} parent=1 // pred_check_branch
      %10 = sbr.rel (0) target = $region5
    $region4: #{tpu_custom_call.1} parent=1 // pred_region
      %s12 = ssub.s32 64, 64
      %13 = vsyncadd [#allocation3], %s12
      %s15 = sshll.u32 [#allocation2], 4
      %s16 = int_to_ptr.vmem [resolvable:$true] %s15
      %18 = dma.hbm_to_vmem [thread:$0]  %s0, 64, %s16, [#allocation3]
    $region5: #{tpu_custom_call.1} parent=1 // pred_fallthru
      _
    // Predicated region
    $region6: #{tpu_custom_call.1} parent=1 // pred_check
      _
    $region7: #{tpu_custom_call.1} parent=1 // pred_check_branch
      %20 = sbr.rel (0) target = $region9
    $region8: #{tpu_custom_call.1} parent=1 // pred_region
      _
    $region9: #{tpu_custom_call.1} parent=1 // pred_fallthru
      _
    // Predicated region
    $region10: #{tpu_custom_call.1} parent=1 // pred_check
      _
    $region11: #{tpu_custom_call.1} parent=1 // pred_check_branch
      %22 = sbr.rel (0) target = $region13
    $region12: #{tpu_custom_call.1} parent=1 // pred_region
      %23 = dma.done [#allocation3], 64
    $region13: #{tpu_custom_call.1} parent=1 // pred_fallthru
      _
    %v24 = vld [vmem:[#allocation2] sm:$0xf]
    %v25 = vld [vmem:[%s1] sm:$0x3]
    %v27 = vlaneseq
    %v28 = vshrl.u32 %v27, 7
    %v29 = vsub.s32 0, %v28
    %v30 = vrot.slane %v25, %v29
    %v31 = vlaneseq
    %v32 = vshrl.u32 %v31, 7
    %v33 = vsub.s32 1, %v32
    %v34 = vrot.slane %v25, %v33
    %v35 = vcombine.low %v30, %v34
    %v37 = vunpack.c.l.s4 1983009808
    %v38 = vunpack.c.0.s8 %v37
    %v39 = vlaneseq
    %v40 = vshrl.u32 %v39, 7
    %v41 = vsub.s32 %v38, %v40
    %v42 = vrot.slane %v35, %v41
    %v44 = vadd.f32 %v24, %v42
    %45 = vst [vmem:[#allocation5] sm:$0xf] %v44
    // Predicated region
    $region14: #{tpu_custom_call.1} parent=1 // pred_check
      _
    $region15: #{tpu_custom_call.1} parent=1 // pred_check_branch
      %47 = sbr.rel (0) target = $region17
    $region16: #{tpu_custom_call.1} parent=1 // pred_region
      %s49 = ssub.s32 64, 64
      %50 = vsyncadd [#allocation4], %s49
      %s52 = sshll.u32 [#allocation5], 4
      %s53 = int_to_ptr.vmem [resolvable:$true] %s52
      %55 = dma.vmem_to_hbm [thread:$0]  %s53, 64, %s2, [#allocation4]
    $region17: #{tpu_custom_call.1} parent=1 // pred_fallthru
      _
    // Predicated region
    $region18: #{tpu_custom_call.1} parent=1 // pred_check
      _
    $region19: #{tpu_custom_call.1} parent=1 // pred_check_branch
      %57 = sbr.rel (0) target = $region21
    $region20: #{tpu_custom_call.1} parent=1 // pred_region
      %58 = dma.done [#allocation4], 64
    $region21: #{tpu_custom_call.1} parent=1 // pred_fallthru
      _
    %59 = vsyncpa [#allocation3], 1
    %60 = vsyncpa [#allocation4], 1

</llo_original>
